<compile_context>
chip_gen: v7x
topology: tpu7x:2x2x1
jax: 0.10.0
libtpu: 0.0.40
codegen_flags: <defaults>
</compile_context>

<pallas_src>
import functools

import jax
import jax.numpy as jnp
from jax.experimental import pallas as pl
from jax.experimental.pallas import tpu as pltpu

EPS = 1e-15        # module-level EPS (only used by .sim(), not on this code path)
BN_EPS = 1e-5      # nn.BatchNorm1d default eps
NORM_EPS = 1e-12   # F.normalize default eps


def _round_up(x, m):
    return ((x + m - 1) // m) * m


def _vmem_capacity_bytes():
    try:
        return int(pltpu.get_tpu_info().vmem_capacity_bytes)
    except Exception:
        return 64 * 2 ** 20          # v7x-safe fallback


def _l2_normalize(x):
    # F.normalize: x / max(||x||, 1e-12)  ==  x * rsqrt(max(||x||^2, 1e-24))
    ss = jnp.sum(x * x, axis=-1, keepdims=True)
    return x * jax.lax.rsqrt(jnp.maximum(ss, NORM_EPS * NORM_EPS))


# ---------------------------------------------------------------------------
# Kernel 1: projection MLP + L2 normalize -> bf16 (N, Pp).
# Single block (batch-stat BatchNorm needs the full column); off the steady-state
# path (O(N*P^2) vs O(N^2*P)), so kept in f32 for BN-statistics accuracy.
# ---------------------------------------------------------------------------
def _proj_kernel(z1_ref, w1_ref, b1_ref, g_ref, bt_ref, w2_ref, b2_ref, zpn_ref):
    x = z1_ref[...]
    h = jnp.dot(x, w1_ref[...], preferred_element_type=jnp.float32) + b1_ref[...]
    mu = jnp.mean(h, axis=0, keepdims=True)
    var = jnp.mean((h - mu) ** 2, axis=0, keepdims=True)      # biased var (train mode)
    h = (h - mu) * jax.lax.rsqrt(var + BN_EPS) * g_ref[...] + bt_ref[...]
    h = jnp.maximum(h, 0.0)
    zp = jnp.dot(h, w2_ref[...], preferred_element_type=jnp.float32) + b2_ref[...]
    zpn_ref[...] = _l2_normalize(zp).astype(zpn_ref.dtype)


# ---------------------------------------------------------------------------
# Kernel 2: row-tiled similarity loop, both infonce directions.
# grid = (ncore "parallel", row-tiles-per-core "arbitrary")
# outputs: per-row side-A terms, per-core side-B column partial sums.
# ---------------------------------------------------------------------------
def _loss_kernel(*refs, inv_tau, identity, tiles_per_core, tq):
    if identity:
        zpn_ref, z2n_ref, rs_ref, ta_ref, cbn_ref, cbz_ref = refs
        pos_ref = post_ref = None
    else:
        zpn_ref, z2n_ref, rs_ref, pos_ref, post_ref, ta_ref, cbn_ref, cbz_ref = refs

    j = pl.program_id(1)

    @pl.when(j == 0)
    def _init():
        cbn_ref[...] = jnp.zeros_like(cbn_ref)
        cbz_ref[...] = jnp.zeros_like(cbz_ref)

    # One bf16 MXU matmul per tile; 1/tau is folded into z2n so s is already sim/tau.
    s = jax.lax.dot_general(zpn_ref[...], z2n_ref[...],
                            (((1,), (1,)), ((), ())),
                            preferred_element_type=jnp.float32)          # (tq, N) f32
    # Constant overflow-safe shift: |s| <= 1/tau, so exp(s - 1/tau) <= ~1.
    e = jnp.exp(s - inv_tau)                                             # ONE exp pass

    if identity:
        p = pl.program_id(0)
        r0 = (p * tiles_per_core + j) * tq
        rows = jax.lax.broadcasted_iota(jnp.int32, s.shape, 0) + r0
        cols = jax.lax.broadcasted_iota(jnp.int32, s.shape, 1)
        pos_blk = (rows == cols).astype(jnp.float32)                     # no mask DMA
        post_blk = pos_blk
    else:
        pos_blk = pos_ref[...].astype(jnp.float32)                       # pos[rows, :]
        post_blk = post_ref[...].astype(jnp.float32)                     # pos.T[rows, :]

    sp = s * pos_blk
    ep = e * pos_blk

    # ---- side A: infonce(z_proj_1, z_2, pos, 1-pos): row reductions ----
    num_a = jnp.sum(sp, axis=1, keepdims=True)                           # (tq, 1)
    z_a = jnp.sum(e, axis=1, keepdims=True) - jnp.sum(ep, axis=1, keepdims=True)
    # exact division by the precomputed positive counts (no approx reciprocal)
    ta_ref[...] = num_a / rs_ref[...] - jnp.log(z_a) - inv_tau

    # ---- side B: infonce(z_2, z_proj_1, pos, 1-pos): column partial sums of the
    #      SAME s / e tiles against pos.T (no NxN transpose, no 2nd matmul) ----
    if identity:
        spb, epb = sp, ep
    else:
        spb = s * post_blk
        epb = e * post_blk
    cbn_ref[...] += jnp.sum(spb, axis=0, keepdims=True)[None]            # (1,1,N)
    cbz_ref[...] += (jnp.sum(e, axis=0, keepdims=True)
                     - jnp.sum(epb, axis=0, keepdims=True))[None]


# ---------------------------------------------------------------------------
# VMEM sizing helpers (buffer counts included, per the review).
# ---------------------------------------------------------------------------
def _loss_resident_bytes(tq, n, pp, mask_streamed):
    ln = _round_up(n, 128)
    b = 1 * n * pp * 2                 # z2n resident, single-buffered (bf16)
    b += 2 * tq * pp * 2               # zpn row tiles, double-buffered (bf16)
    b += 2 * tq * 128 * 4              # rs row tiles (lane-padded), double-buffered
    if mask_streamed:
        b += 2 * 2 * tq * ln * 2       # pos + pos.T bf16 tiles, double-buffered
    b += 6 * tq * ln * 4               # s / e / mask / sp / ep f32 temporaries
    b += 2 * tq * 128 * 4              # side-A output tiles, double-buffered
    b += 2 * 2 * 8 * ln * 4            # side-B column partial output blocks
    return b


def _pick_row_tile(n, pp, mask_streamed, budget):
    """Largest VMEM-fitting row tile (<=512); prefer >=4 tiles so the accumulation
    loop / 2-core split actually engages."""
    if n % 8 != 0:
        return n                       # TODO(synk): ragged N -> single full-row tile
    cands = [t for t in (512, 256, 128, 64, 32, 16, 8) if t <= n and n % t == 0]
    if not cands:
        return n
    fitting = [t for t in cands if _loss_resident_bytes(t, n, pp, mask_streamed) <= budget]
    if not fitting:
        return cands[-1]
    multi = [t for t in fitting if n // t >= 4]
    return multi[0] if multi else fitting[0]


# ---------------------------------------------------------------------------
# Wrapper
# ---------------------------------------------------------------------------
def contrast2_forward(z1, z2, pos, params, tau, *, pos_is_identity=False):
    """Full-batch Contrast2 forward.  Precondition: every row of pos has >= 1 positive
    (matches the reference, which would otherwise also divide by zero)."""
    w1, b1, gamma, beta, w2, b2 = params
    N, H = z1.shape
    P = w1.shape[1]
    Hp, Pp = _round_up(H, 128), _round_up(P, 128)
    inv_tau = float(1.0 / tau)
    cap = _vmem_capacity_bytes()

    # ---- stage 1: projection MLP kernel (zero lane-padding is exactly neutral:
    #      gamma pads with 1, beta/bias/weight pads with 0) -------------------------
    z1p = jnp.pad(z1.astype(jnp.float32), ((0, 0), (0, Hp - H)))
    w1p = jnp.pad(w1.astype(jnp.float32), ((0, Hp - H), (0, Pp - P)))
    w2p = jnp.pad(w2.astype(jnp.float32), ((0, Pp - P), (0, Pp - P)))
    b1p = jnp.pad(b1.astype(jnp.float32), ((0, 0), (0, Pp - P)))
    b2p = jnp.pad(b2.astype(jnp.float32), ((0, 0), (0, Pp - P)))
    gp = jnp.pad(gamma.astype(jnp.float32), ((0, 0), (0, Pp - P)), constant_values=1.0)
    bp = jnp.pad(beta.astype(jnp.float32), ((0, 0), (0, Pp - P)))

    def full1(shape):
        return pl.BlockSpec(shape, lambda i, _n=len(shape): (0,) * _n)

    proj_in = (z1p, w1p, b1p, gp, bp, w2p, b2p)
    proj_bytes = sum(int(x.size) * 4 for x in proj_in) + N * Pp * 2
    zpn = pl.pallas_call(
        _proj_kernel,
        grid_spec=pltpu.PrefetchScalarGridSpec(
            num_scalar_prefetch=0, grid=(1,),
            in_specs=[full1(x.shape) for x in proj_in],
            out_specs=full1((N, Pp))),
        out_shape=jax.ShapeDtypeStruct((N, Pp), jnp.bfloat16),
        compiler_params=pltpu.CompilerParams(
            dimension_semantics=("arbitrary",),
            vmem_limit_bytes=int(min(0.9 * cap, max(32 * 2 ** 20, 3 * proj_bytes)))),
    )(*proj_in)

    # ---- stage 2: z2 prep + positive counts in the wrapper (free XLA fusion) ------
    z2n = _l2_normalize(z2.astype(jnp.float32))
    z2n = (jnp.pad(z2n, ((0, 0), (0, Pp - P))) * inv_tau).astype(jnp.bfloat16)  # fold 1/tau
    if pos_is_identity:
        rowsum = jnp.ones((N,), jnp.float32)
    else:
        rowsum = pos.astype(jnp.float32).sum(axis=1)
    rs2d = rowsum.reshape(N, 1)

    # ---- stage 3: row-tiled loss kernel --------------------------------------------
    mask_streamed = not pos_is_identity
    tq = _pick_row_tile(N, Pp, mask_streamed, int(0.55 * cap))
    n_tiles = max(N // tq, 1)
    ncore = 2 if (n_tiles % 2 == 0 and n_tiles >= 2) else 1
    tpc = n_tiles // ncore                                # row tiles per core

    def row_map(p, j, _tpc=tpc):
        return (p * _tpc + j, 0)

    try:   # constant-index resident input: single buffer (halves its VMEM)
        z2n_spec = pl.BlockSpec((N, Pp), lambda p, j: (0, 0),
                                pipeline_mode=pl.Buffered(1))
    except Exception:
        z2n_spec = pl.BlockSpec((N, Pp), lambda p, j: (0, 0))

    in_specs = [pl.BlockSpec((tq, Pp), row_map),          # zpn row tiles (bf16)
                z2n_spec,                                 # z2n, resident
                pl.BlockSpec((tq, 1), row_map)]           # pos.sum(1) row tiles
    inputs = [zpn, z2n, rs2d]
    if mask_streamed:
        posb = pos.astype(jnp.bfloat16)                   # 2x less DMA than f32
        postb = jnp.transpose(pos).astype(jnp.bfloat16)
        in_specs += [pl.BlockSpec((tq, N), row_map),
                     pl.BlockSpec((tq, N), row_map)]
        inputs += [posb, postb]

    out_shape = (jax.ShapeDtypeStruct((N, 1), jnp.float32),          # side-A per-row terms
                 jax.ShapeDtypeStruct((ncore, 1, N), jnp.float32),   # side-B numer partials
                 jax.ShapeDtypeStruct((ncore, 1, N), jnp.float32))   # side-B denom partials
    out_specs = (pl.BlockSpec((tq, 1), row_map),
                 pl.BlockSpec((1, 1, N), lambda p, j: (p, 0, 0)),
                 pl.BlockSpec((1, 1, N), lambda p, j: (p, 0, 0)))

    vmem_limit = int(min(0.9 * cap,
                         max(32 * 2 ** 20,
                             int(1.5 * _loss_resident_bytes(tq, N, Pp, mask_streamed)))))

    kernel = functools.partial(_loss_kernel, inv_tau=inv_tau, identity=pos_is_identity,
                               tiles_per_core=tpc, tq=tq)
    ta, cbn, cbz = pl.pallas_call(
        kernel,
        grid_spec=pltpu.PrefetchScalarGridSpec(
            num_scalar_prefetch=0,
            grid=(ncore, tpc),
            in_specs=in_specs,
            out_specs=out_specs),
        out_shape=out_shape,
        compiler_params=pltpu.CompilerParams(
            dimension_semantics=("parallel", "arbitrary"),   # 2 TCs on v7x; acc along j
            vmem_limit_bytes=vmem_limit),
    )(*inputs)

    # ---- stage 4: tiny O(N) finalize in the wrapper (XLA-fused) --------------------
    term_a = ta[:, 0]                                     # (N,)
    cbnum = jnp.sum(cbn, axis=0)[0]                       # reduce per-core partials
    cbneg = jnp.sum(cbz, axis=0)[0]
    term_b = cbnum / rowsum - (jnp.log(cbneg) + inv_tau)
    return -(jnp.sum(term_a) + jnp.sum(term_b)) / (2.0 * N)


# Pure-JAX reference (unpadded, f32) — correctness check only.
def reference_forward(z1, z2, pos, params, tau):
    w1, b1, gamma, beta, w2, b2 = params
    h = z1 @ w1 + b1
    mean = h.mean(0, keepdims=True)
    var = ((h - mean) ** 2).mean(0, keepdims=True)
    h = (h - mean) / jnp.sqrt(var + BN_EPS) * gamma + beta
    h = jnp.maximum(h, 0.0)
    zp = h @ w2 + b2

    def norm(x):
        return x / jnp.maximum(jnp.linalg.norm(x, axis=-1, keepdims=True), NORM_EPS)

    def infonce(anchor, sample):
        s = norm(anchor) @ norm(sample).T / tau
        exp_sim = jnp.exp(s) * (1.0 - pos)
        log_prob = s - jnp.log(exp_sim.sum(1, keepdims=True))
        l = (log_prob * pos).sum(1) / pos.sum(1)
        return -l.mean()

    return (infonce(zp, z2) + infonce(z2, zp)) / 2.0


if __name__ == "__main__":
    N, H, P = 64, 32, 32          # nnodes, hidden_dim, project_dim
    tau = 0.5                     # batch_size == 0 -> full-batch branch of forward()

    key = jax.random.PRNGKey(0)
    ks = jax.random.split(key, 7)
    z_1 = jax.random.normal(ks[0], (N, H), jnp.float32)
    z_2 = jax.random.normal(ks[1], (N, P), jnp.float32)

    # proj_1 parameters (deterministic init; Linear weights ~ kaiming_normal).
    w1 = jax.random.normal(ks[2], (H, P), jnp.float32) * (2.0 / H) ** 0.5
    b1 = jax.random.uniform(ks[3], (1, P), jnp.float32, -(H ** -0.5), H ** -0.5)
    gamma = jnp.ones((1, P), jnp.float32)
    beta = jnp.zeros((1, P), jnp.float32)
    w2 = jax.random.normal(ks[4], (P, P), jnp.float32) * (2.0 / P) ** 0.5
    b2 = jax.random.uniform(ks[5], (1, P), jnp.float32, -(P ** -0.5), P ** -0.5)
    params = (w1, b1, gamma, beta, w2, b2)

    # Tolerance: bf16 MXU operands (f32 accumulate / log) carry ~3 decimal digits;
    # all divisions are exact, so 1e-2 is comfortable head-room.
    RTOL = ATOL = 1e-2

    # Case 1: identity positive mask (usual GCL setup) -> in-kernel mask generation.
    pos_eye = jnp.eye(N, dtype=jnp.float32)
    loss_id = jax.block_until_ready(
        contrast2_forward(z_1, z_2, None, params, tau, pos_is_identity=True))
    ref_id = reference_forward(z_1, z_2, pos_eye, params, tau)
    assert jnp.allclose(loss_id, ref_id, rtol=RTOL, atol=ATOL), (loss_id, ref_id)

    # Case 2: general (asymmetric) dense positive mask, streamed as bf16 tiles.
    extra = (jax.random.uniform(ks[6], (N, N)) < 0.1).astype(jnp.float32)
    pos_gen = jnp.clip(pos_eye + extra, 0.0, 1.0)      # guarantees >=1 positive per row
    loss_gen = jax.block_until_ready(
        contrast2_forward(z_1, z_2, pos_gen, params, tau, pos_is_identity=False))
    ref_gen = reference_forward(z_1, z_2, pos_gen, params, tau)
    assert jnp.allclose(loss_gen, ref_gen, rtol=RTOL, atol=ATOL), (loss_gen, ref_gen)

    print("KERNEL_OK")
</pallas_src>

<mosaic_0001>
module attributes {stable_mosaic.version = 11 : i64} {
  func.func @_proj_kernel(%arg0: i32, %arg1: memref<64x128xf32, #tpu.memory_space<vmem>>, %arg2: memref<128x128xf32, #tpu.memory_space<vmem>>, %arg3: memref<1x128xf32, #tpu.memory_space<vmem>>, %arg4: memref<1x128xf32, #tpu.memory_space<vmem>>, %arg5: memref<1x128xf32, #tpu.memory_space<vmem>>, %arg6: memref<128x128xf32, #tpu.memory_space<vmem>>, %arg7: memref<1x128xf32, #tpu.memory_space<vmem>>, %arg8: memref<64x128xbf16, #tpu.memory_space<vmem>>) attributes {dimension_semantics = [#tpu.dimension_semantics<arbitrary>], iteration_bounds = array<i64: 1>, scalar_prefetch = 0 : i64, scratch_operands = 0 : i64, tpu.core_type = #tpu.core_type<tc>, window_params = [{pipeline_mode = #tpu.pipeline_mode<synchronous>, transform_indices = @transform_0, window_bounds = array<i64: 64, 128>}, {pipeline_mode = #tpu.pipeline_mode<synchronous>, transform_indices = @transform_1, window_bounds = array<i64: 128, 128>}, {pipeline_mode = #tpu.pipeline_mode<synchronous>, transform_indices = @transform_2, window_bounds = array<i64: 1, 128>}, {pipeline_mode = #tpu.pipeline_mode<synchronous>, transform_indices = @transform_3, window_bounds = array<i64: 1, 128>}, {pipeline_mode = #tpu.pipeline_mode<synchronous>, transform_indices = @transform_4, window_bounds = array<i64: 1, 128>}, {pipeline_mode = #tpu.pipeline_mode<synchronous>, transform_indices = @transform_5, window_bounds = array<i64: 128, 128>}, {pipeline_mode = #tpu.pipeline_mode<synchronous>, transform_indices = @transform_6, window_bounds = array<i64: 1, 128>}, {pipeline_mode = #tpu.pipeline_mode<synchronous>, transform_indices = @transform_7, window_bounds = array<i64: 64, 128>}]} {
    %c0 = arith.constant 0 : index
    %c0_0 = arith.constant 0 : index
    %0 = vector.load %arg1[%c0, %c0_0] : memref<64x128xf32, #tpu.memory_space<vmem>>, vector<64x128xf32>
    %c0_1 = arith.constant 0 : index
    %c0_2 = arith.constant 0 : index
    %1 = vector.load %arg2[%c0_1, %c0_2] : memref<128x128xf32, #tpu.memory_space<vmem>>, vector<128x128xf32>
    %cst = arith.constant dense<0.000000e+00> : vector<64x128xf32>
    %2 = tpu.matmul %0, %1, %cst {dimension_numbers = #tpu.dot_dimension_numbers<[1], [0], [0], [1], [0, 0, 1, 1], [], []>} : vector<64x128xf32>, vector<128x128xf32>, vector<64x128xf32> -> vector<64x128xf32>
    %c0_3 = arith.constant 0 : index
    %c0_4 = arith.constant 0 : index
    %3 = vector.load %arg3[%c0_3, %c0_4] : memref<1x128xf32, #tpu.memory_space<vmem>>, vector<1x128xf32>
    %4 = vector.broadcast %3 : vector<1x128xf32> to vector<64x128xf32>
    %5 = arith.addf %2, %4 : vector<64x128xf32>
    %cst_5 = arith.constant dense<0.000000e+00> : vector<128xf32>
    %6 = vector.multi_reduction <add>, %5, %cst_5 [0] : vector<64x128xf32> to vector<128xf32>
    %7 = vector.shape_cast %6 : vector<128xf32> to vector<1x128xf32>
    %cst_6 = arith.constant 6.400000e+01 : f32
    %8 = vector.broadcast %cst_6 : f32 to vector<1x128xf32>
    %9 = arith.divf %7, %8 : vector<1x128xf32>
    %10 = vector.broadcast %9 : vector<1x128xf32> to vector<64x128xf32>
    %11 = arith.subf %5, %10 : vector<64x128xf32>
    %12 = arith.mulf %11, %11 : vector<64x128xf32>
    %cst_7 = arith.constant dense<0.000000e+00> : vector<128xf32>
    %13 = vector.multi_reduction <add>, %12, %cst_7 [0] : vector<64x128xf32> to vector<128xf32>
    %14 = vector.shape_cast %13 : vector<128xf32> to vector<1x128xf32>
    %cst_8 = arith.constant 6.400000e+01 : f32
    %15 = vector.broadcast %cst_8 : f32 to vector<1x128xf32>
    %16 = arith.divf %14, %15 : vector<1x128xf32>
    %17 = vector.broadcast %9 : vector<1x128xf32> to vector<64x128xf32>
    %18 = arith.subf %5, %17 : vector<64x128xf32>
    %cst_9 = arith.constant 9.99999974E-6 : f32
    %19 = vector.broadcast %cst_9 : f32 to vector<1x128xf32>
    %20 = arith.addf %16, %19 : vector<1x128xf32>
    %21 = math.rsqrt %20 : vector<1x128xf32>
    %22 = vector.broadcast %21 : vector<1x128xf32> to vector<64x128xf32>
    %23 = arith.mulf %18, %22 : vector<64x128xf32>
    %c0_10 = arith.constant 0 : index
    %c0_11 = arith.constant 0 : index
    %24 = vector.load %arg4[%c0_10, %c0_11] : memref<1x128xf32, #tpu.memory_space<vmem>>, vector<1x128xf32>
    %25 = vector.broadcast %24 : vector<1x128xf32> to vector<64x128xf32>
    %26 = arith.mulf %23, %25 : vector<64x128xf32>
    %c0_12 = arith.constant 0 : index
    %c0_13 = arith.constant 0 : index
    %27 = vector.load %arg5[%c0_12, %c0_13] : memref<1x128xf32, #tpu.memory_space<vmem>>, vector<1x128xf32>
    %28 = vector.broadcast %27 : vector<1x128xf32> to vector<64x128xf32>
    %29 = arith.addf %26, %28 : vector<64x128xf32>
    %cst_14 = arith.constant 0.000000e+00 : f32
    %30 = vector.broadcast %cst_14 : f32 to vector<64x128xf32>
    %31 = arith.maximumf %29, %30 : vector<64x128xf32>
    %c0_15 = arith.constant 0 : index
    %c0_16 = arith.constant 0 : index
    %32 = vector.load %arg6[%c0_15, %c0_16] : memref<128x128xf32, #tpu.memory_space<vmem>>, vector<128x128xf32>
    %cst_17 = arith.constant dense<0.000000e+00> : vector<64x128xf32>
    %33 = tpu.matmul %31, %32, %cst_17 {dimension_numbers = #tpu.dot_dimension_numbers<[1], [0], [0], [1], [0, 0, 1, 1], [], []>} : vector<64x128xf32>, vector<128x128xf32>, vector<64x128xf32> -> vector<64x128xf32>
    %c0_18 = arith.constant 0 : index
    %c0_19 = arith.constant 0 : index
    %34 = vector.load %arg7[%c0_18, %c0_19] : memref<1x128xf32, #tpu.memory_space<vmem>>, vector<1x128xf32>
    %35 = vector.broadcast %34 : vector<1x128xf32> to vector<64x128xf32>
    %36 = arith.addf %33, %35 : vector<64x128xf32>
    %37 = arith.mulf %36, %36 : vector<64x128xf32>
    %cst_20 = arith.constant dense<0.000000e+00> : vector<64xf32>
    %38 = vector.multi_reduction <add>, %37, %cst_20 [1] : vector<64x128xf32> to vector<64xf32>
    %39 = vector.shape_cast %38 : vector<64xf32> to vector<64x1xf32>
    %cst_21 = arith.constant 1.000000e-24 : f32
    %40 = vector.broadcast %cst_21 : f32 to vector<64x1xf32>
    %41 = arith.maximumf %39, %40 : vector<64x1xf32>
    %42 = math.rsqrt %41 : vector<64x1xf32>
    %43 = vector.broadcast %42 : vector<64x1xf32> to vector<64x128xf32>
    %44 = arith.mulf %36, %43 : vector<64x128xf32>
    %45 = arith.truncf %44 : vector<64x128xf32> to vector<64x128xbf16>
    %c0_22 = arith.constant 0 : index
    %c0_23 = arith.constant 0 : index
    %46 = vector.load %arg8[%c0_22, %c0_23] : memref<64x128xbf16, #tpu.memory_space<vmem>>, vector<64x128xbf16>
    tpu.vector_store %arg8[%c0_22, %c0_23], %45 {strides = array<i32>} : memref<64x128xbf16, #tpu.memory_space<vmem>>, vector<64x128xbf16>,
    return
  }
  func.func @transform_0(%arg0: i32) -> (i32, i32) {
    %c0_i32 = arith.constant 0 : i32
    %c0_i32_0 = arith.constant 0 : i32
    %c0_i32_1 = arith.constant 0 : i32
    return %c0_i32, %c0_i32_0 : i32, i32
  }
  func.func @transform_1(%arg0: i32) -> (i32, i32) {
    %c0_i32 = arith.constant 0 : i32
    %c0_i32_0 = arith.constant 0 : i32
    %c0_i32_1 = arith.constant 0 : i32
    return %c0_i32, %c0_i32_0 : i32, i32
  }
  func.func @transform_2(%arg0: i32) -> (i32, i32) {
    %c0_i32 = arith.constant 0 : i32
    %c0_i32_0 = arith.constant 0 : i32
    %c0_i32_1 = arith.constant 0 : i32
    return %c0_i32, %c0_i32_0 : i32, i32
  }
  func.func @transform_3(%arg0: i32) -> (i32, i32) {
    %c0_i32 = arith.constant 0 : i32
    %c0_i32_0 = arith.constant 0 : i32
    %c0_i32_1 = arith.constant 0 : i32
    return %c0_i32, %c0_i32_0 : i32, i32
  }
  func.func @transform_4(%arg0: i32) -> (i32, i32) {
    %c0_i32 = arith.constant 0 : i32
    %c0_i32_0 = arith.constant 0 : i32
    %c0_i32_1 = arith.constant 0 : i32
    return %c0_i32, %c0_i32_0 : i32, i32
  }
  func.func @transform_5(%arg0: i32) -> (i32, i32) {
    %c0_i32 = arith.constant 0 : i32
    %c0_i32_0 = arith.constant 0 : i32
    %c0_i32_1 = arith.constant 0 : i32
    return %c0_i32, %c0_i32_0 : i32, i32
  }
  func.func @transform_6(%arg0: i32) -> (i32, i32) {
    %c0_i32 = arith.constant 0 : i32
    %c0_i32_0 = arith.constant 0 : i32
    %c0_i32_1 = arith.constant 0 : i32
    return %c0_i32, %c0_i32_0 : i32, i32
  }
  func.func @transform_7(%arg0: i32) -> (i32, i32) {
    %c0_i32 = arith.constant 0 : i32
    %c0_i32_0 = arith.constant 0 : i32
    %c0_i32_1 = arith.constant 0 : i32
    return %c0_i32, %c0_i32_0 : i32, i32
  }
}

</mosaic_0001>

<llo_original>
// kernel: tpu_custom_call.1
$region0: #{tpu_custom_call.1}
  #allocation0 [shape = 'u32[]', space=smem, size = 0x4, offset = 0x4, fixed_abs, tag = 'smem constant byte address 0x4 - core index']
  #allocation1 [shape = 'u32[144,128]{1,0:T(1,128)}', space=vmem, size = 0x12000, scoped, tag = 'internal scratch']
  %s0 = inlined_call_operand.hbm [shape: f32[64,128], index: 0, kind: input, shape index: {}]
  %s1 = inlined_call_operand.hbm [shape: f32[128,128], index: 1, kind: input, shape index: {}]
  %s2 = inlined_call_operand.vmem [shape: f32[1,128], index: 2, kind: input, shape index: {}]
  %s3 = inlined_call_operand.vmem [shape: f32[1,128], index: 3, kind: input, shape index: {}]
  %s4 = inlined_call_operand.vmem [shape: f32[1,128], index: 4, kind: input, shape index: {}]
  %s5 = inlined_call_operand.hbm [shape: f32[128,128], index: 5, kind: input, shape index: {}]
  %s6 = inlined_call_operand.vmem [shape: f32[1,128], index: 6, kind: input, shape index: {}]
  %s7 = inlined_call_operand.hbm [shape: bf16[64,128], index: 7, kind: output, shape index: {}]
  %s8 = sld [smem:[#allocation0]]
  $region50: #{tpu_custom_call.1} parent=0
    _
  %s10 = ssub.s32 1, %s8
  %s11 = scalar_select 0, %s10, %s8
  $region1: #{tpu_custom_call.1} parent=0
    #allocation2 [shape = 'u8[32768]{0}', space=vmem, size = 0x8000, scoped, tag = 'input window, operand 0, single buffered']
    #allocation3 [shape = 's32[1]{0}', space=sflag, size = 0x4, scoped, tag = 'scoped memory for tpu_custom_call.1']
    #allocation4 [shape = 's32[1]{0}', space=sflag, size = 0x4, scoped, tag = 'scoped memory for tpu_custom_call.1']
    #allocation5 [shape = 'u8[65536]{0}', space=vmem, size = 0x10000, scoped, tag = 'input window, operand 1, single buffered']
    #allocation6 [shape = 's32[1]{0}', space=sflag, size = 0x4, scoped, tag = 'scoped memory for tpu_custom_call.1']
    #allocation7 [shape = 'u8[65536]{0}', space=vmem, size = 0x10000, scoped, tag = 'input window, operand 5, single buffered']
    #allocation8 [shape = 'u8[16384]{0}', space=vmem, size = 0x4000, scoped, tag = 'output window, operand 0, single buffered']
    %12 = vsyncpa [#allocation3], 0
    %13 = vsyncpa [#allocation6], 0
    %14 = vsyncpa [#allocation4], 0
    // Predicated region
    $region2: #{tpu_custom_call.1} parent=1 // pred_check
      _
    $region3: #{tpu_custom_call.1} parent=1 // pred_check_branch
      %16 = sbr.rel (0) target = $region5
    $region4: #{tpu_custom_call.1} parent=1 // pred_region
      %s18 = ssub.s32 1024, 1024
      %19 = vsyncadd [#allocation3], %s18
      %s20 = sshll.u32 [#allocation2], 4
      %s21 = int_to_ptr.vmem [resolvable:$true] %s20
      %26 = dma.hbm_to_vmem [thread:$0]  %s0, 1024, %s21, [#allocation3], 128, 128, 8
    $region5: #{tpu_custom_call.1} parent=1 // pred_fallthru
      _
    // Predicated region
    $region6: #{tpu_custom_call.1} parent=1 // pred_check
      _
    $region7: #{tpu_custom_call.1} parent=1 // pred_check_branch
      %28 = sbr.rel (0) target = $region9
    $region8: #{tpu_custom_call.1} parent=1 // pred_region
      %s30 = ssub.s32 2048, 2048
      %31 = vsyncadd [#allocation6], %s30
      %s32 = sshll.u32 [#allocation5], 4
      %s33 = int_to_ptr.vmem [resolvable:$true] %s32
      %38 = dma.hbm_to_vmem [thread:$0]  %s1, 2048, %s33, [#allocation6], 128, 128, 8
    $region9: #{tpu_custom_call.1} parent=1 // pred_fallthru
      _
    // Predicated region
    $region10: #{tpu_custom_call.1} parent=1 // pred_check
      _
    $region11: #{tpu_custom_call.1} parent=1 // pred_check_branch
      %40 = sbr.rel (0) target = $region13
    $region12: #{tpu_custom_call.1} parent=1 // pred_region
      _
    $region13: #{tpu_custom_call.1} parent=1 // pred_fallthru
      _
    // Predicated region
    $region14: #{tpu_custom_call.1} parent=1 // pred_check
      _
    $region15: #{tpu_custom_call.1} parent=1 // pred_check_branch
      %42 = sbr.rel (0) target = $region17
    $region16: #{tpu_custom_call.1} parent=1 // pred_region
      _
    $region17: #{tpu_custom_call.1} parent=1 // pred_fallthru
      _
    // Predicated region
    $region18: #{tpu_custom_call.1} parent=1 // pred_check
      _
    $region19: #{tpu_custom_call.1} parent=1 // pred_check_branch
      %44 = sbr.rel (0) target = $region21
    $region20: #{tpu_custom_call.1} parent=1 // pred_region
      _
    $region21: #{tpu_custom_call.1} parent=1 // pred_fallthru
      _
    // Predicated region
    $region22: #{tpu_custom_call.1} parent=1 // pred_check
      _
    $region23: #{tpu_custom_call.1} parent=1 // pred_check_branch
      %46 = sbr.rel (0) target = $region25
    $region24: #{tpu_custom_call.1} parent=1 // pred_region
      %s48 = ssub.s32 2048, 2048
      %49 = vsyncadd [#allocation6], %s48
      %s50 = sshll.u32 [#allocation7], 4
      %s51 = int_to_ptr.vmem [resolvable:$true] %s50
      %56 = dma.hbm_to_vmem [thread:$0]  %s5, 2048, %s51, [#allocation6], 128, 128, 8
    $region25: #{tpu_custom_call.1} parent=1 // pred_fallthru
      _
    // Predicated region
    $region26: #{tpu_custom_call.1} parent=1 // pred_check
      _
    $region27: #{tpu_custom_call.1} parent=1 // pred_check_branch
      %58 = sbr.rel (0) target = $region29
    $region28: #{tpu_custom_call.1} parent=1 // pred_region
      _
    $region29: #{tpu_custom_call.1} parent=1 // pred_fallthru
      _
    // Predicated region
    $region30: #{tpu_custom_call.1} parent=1 // pred_check
      _
    $region31: #{tpu_custom_call.1} parent=1 // pred_check_branch
      %60 = sbr.rel (0) target = $region33
    $region32: #{tpu_custom_call.1} parent=1 // pred_region
      %61 = dma.done [#allocation3], 1024
    $region33: #{tpu_custom_call.1} parent=1 // pred_fallthru
      _
    // Predicated region
    $region34: #{tpu_custom_call.1} parent=1 // pred_check
      _
    $region35: #{tpu_custom_call.1} parent=1 // pred_check_branch
      %63 = sbr.rel (0) target = $region37
    $region36: #{tpu_custom_call.1} parent=1 // pred_region
      %64 = dma.done [#allocation6], 2048
    $region37: #{tpu_custom_call.1} parent=1 // pred_fallthru
      _
    // Predicated region
    $region38: #{tpu_custom_call.1} parent=1 // pred_check
      _
    $region39: #{tpu_custom_call.1} parent=1 // pred_check_branch
      %66 = sbr.rel (0) target = $region41
    $region40: #{tpu_custom_call.1} parent=1 // pred_region
      %67 = dma.done [#allocation6], 2048
    $region41: #{tpu_custom_call.1} parent=1 // pred_fallthru
      _
    %v68 = vld [vmem:[#allocation2] sm:$0xff]
    %v69 = vld [vmem:[#allocation2 + $0x8] sm:$0xff]
    %v70 = vld [vmem:[#allocation2 + $0x10] sm:$0xff]
    %v71 = vld [vmem:[#allocation2 + $0x18] sm:$0xff]
    %v72 = vld [vmem:[#allocation2 + $0x20] sm:$0xff]
    %v73 = vld [vmem:[#allocation2 + $0x28] sm:$0xff]
    %v74 = vld [vmem:[#allocation2 + $0x30] sm:$0xff]
    %v75 = vld [vmem:[#allocation2 + $0x38] sm:$0xff]
    %v76 = vld [vmem:[#allocation5] sm:$0xff]
    %v77 = vld [vmem:[#allocation5 + $0x8] sm:$0xff]
    %v78 = vld [vmem:[#allocation5 + $0x10] sm:$0xff]
    %v79 = vld [vmem:[#allocation5 + $0x18] sm:$0xff]
    %v80 = vld [vmem:[#allocation5 + $0x20] sm:$0xff]
    %v81 = vld [vmem:[#allocation5 + $0x28] sm:$0xff]
    %v82 = vld [vmem:[#allocation5 + $0x30] sm:$0xff]
    %v83 = vld [vmem:[#allocation5 + $0x38] sm:$0xff]
    %v84 = vld [vmem:[#allocation5 + $0x40] sm:$0xff]
    %v85 = vld [vmem:[#allocation5 + $0x48] sm:$0xff]
    %v86 = vld [vmem:[#allocation5 + $0x50] sm:$0xff]
    %v87 = vld [vmem:[#allocation5 + $0x58] sm:$0xff]
    %v88 = vld [vmem:[#allocation5 + $0x60] sm:$0xff]
    %v89 = vld [vmem:[#allocation5 + $0x68] sm:$0xff]
    %v90 = vld [vmem:[#allocation5 + $0x70] sm:$0xff]
    %v91 = vld [vmem:[#allocation5 + $0x78] sm:$0xff]
    %v92 = vld [vmem:[%s2] sm:$0x1]
    %v94 = vlaneseq
    %v95 = vshrl.u32 %v94, 7
    %v96 = vsub.s32 0, %v95
    %v97 = vrot.slane %v92, %v96
    %99 = vmatprep.subr.mxu0 0.0
    %100 = vmatpush1.msra.mxu0 %v76
    %101 = vmatprep.subr.mxu0 0.0
    %102 = vmatpush1.msra.mxu0 %v77
    %103 = vmatprep.subr.mxu0 0.0
    %104 = vmatpush1.msra.mxu0 %v78
    %105 = vmatprep.subr.mxu0 0.0
    %106 = vmatpush1.msra.mxu0 %v79
    %107 = vmatprep.subr.mxu0 0.0
    %108 = vmatpush1.msra.mxu0 %v80
    %109 = vmatprep.subr.mxu0 0.0
    %110 = vmatpush1.msra.mxu0 %v81
    %111 = vmatprep.subr.mxu0 0.0
    %112 = vmatpush1.msra.mxu0 %v82
    %113 = vmatprep.subr.mxu0 0.0
    %114 = vmatpush1.msra.mxu0 %v83
    %115 = vmatprep.subr.mxu0 0.0
    %116 = vmatpush1.msra.mxu0 %v84
    %117 = vmatprep.subr.mxu0 0.0
    %118 = vmatpush1.msra.mxu0 %v85
    %119 = vmatprep.subr.mxu0 0.0
    %120 = vmatpush1.msra.mxu0 %v86
    %121 = vmatprep.subr.mxu0 0.0
    %122 = vmatpush1.msra.mxu0 %v87
    %123 = vmatprep.subr.mxu0 0.0
    %124 = vmatpush1.msra.mxu0 %v88
    %125 = vmatprep.subr.mxu0 0.0
    %126 = vmatpush1.msra.mxu0 %v89
    %127 = vmatprep.subr.mxu0 0.0
    %128 = vmatpush1.msra.mxu0 %v90
    %129 = vmatprep.subr.mxu0 0.0
    %130 = vmatpush1.msra.mxu0 %v91
    %131 = vmatprep.subr.mxu0 0.0
    %132 = vmatpush1.msra.mxu0 0.0
    %133 = vmatprep.subr.mxu0 0.0
    %134 = vmatpush1.msra.mxu0 0.0
    %135 = vmatprep.subr.mxu0 0.0
    %136 = vmatpush1.msra.mxu0 0.0
    %137 = vmatprep.subr.mxu0 0.0
    %138 = vmatpush1.msra.mxu0 0.0
    %139 = vmatprep.subr.mxu0 0.0
    %140 = vmatpush1.msra.mxu0 0.0
    %141 = vmatprep.subr.mxu0 0.0
    %142 = vmatpush1.msra.mxu0 0.0
    %143 = vmatprep.subr.mxu0 0.0
    %144 = vmatpush1.msra.mxu0 0.0
    %145 = vmatprep.subr.mxu0 0.0
    %146 = vmatpush1.msra.mxu0 0.0
    %147 = vmatprep.subr.mxu0 0.0
    %148 = vmatpush1.msra.mxu0 0.0
    %149 = vmatprep.subr.mxu0 0.0
    %150 = vmatpush1.msra.mxu0 0.0
    %151 = vmatprep.subr.mxu0 0.0
    %152 = vmatpush1.msra.mxu0 0.0
    %153 = vmatprep.subr.mxu0 0.0
    %154 = vmatpush1.msra.mxu0 0.0
    %155 = vmatprep.subr.mxu0 0.0
    %156 = vmatpush1.msra.mxu0 0.0
    %157 = vmatprep.subr.mxu0 0.0
    %158 = vmatpush1.msra.mxu0 0.0
    %159 = vmatprep.subr.mxu0 0.0
    %160 = vmatpush1.msra.mxu0 0.0
    %161 = vmatprep.subr.mxu0 0.0
    %162 = vmatpush1.msra.mxu0 0.0
    %163 = vmatprep.mubr.f32.mxu0 0.0
    %164 = vmatmul.mubr.f32.gmra.mrb[0].mxu0 %v68
    %v165 = vpop.f32.mrb[0].mxu0
    %v166 = vadd.f32 %v97, %v165
    %v167 = vpop.f32.mrb[0].mxu0
    %168 = vmatprep.mubr.f32.mxu0 0.0
    %169 = vmatmul.mubr.f32.gmra.mrb[0].mxu0 %v69
    %v170 = vpop.f32.mrb[0].mxu0
    %v171 = vadd.f32 %v97, %v170
    %v172 = vpop.f32.mrb[0].mxu0
    %173 = vmatprep.mubr.f32.mxu0 0.0
    %174 = vmatmul.mubr.f32.gmra.mrb[0].mxu0 %v70
    %v175 = vpop.f32.mrb[0].mxu0
    %v176 = vadd.f32 %v97, %v175
    %v177 = vpop.f32.mrb[0].mxu0
    %178 = vmatprep.mubr.f32.mxu0 0.0
    %179 = vmatmul.mubr.f32.gmra.mrb[0].mxu0 %v71
    %v180 = vpop.f32.mrb[0].mxu0
    %v181 = vadd.f32 %v97, %v180
    %v182 = vpop.f32.mrb[0].mxu0
    %183 = vmatprep.mubr.f32.mxu0 0.0
    %184 = vmatmul.mubr.f32.gmra.mrb[0].mxu0 %v72
    %v185 = vpop.f32.mrb[0].mxu0
    %v186 = vadd.f32 %v97, %v185
    %v187 = vpop.f32.mrb[0].mxu0
    %188 = vmatprep.mubr.f32.mxu0 0.0
    %189 = vmatmul.mubr.f32.gmra.mrb[0].mxu0 %v73
    %v190 = vpop.f32.mrb[0].mxu0
    %v191 = vadd.f32 %v97, %v190
    %v192 = vpop.f32.mrb[0].mxu0
    %193 = vmatprep.mubr.f32.mxu0 0.0
    %194 = vmatmul.mubr.f32.gmra.mrb[0].mxu0 %v74
    %v195 = vpop.f32.mrb[0].mxu0
    %v196 = vadd.f32 %v97, %v195
    %v197 = vpop.f32.mrb[0].mxu0
    %198 = vmatprep.mubr.f32.mxu0 0.0
    %199 = vmatmul.mubr.f32.gmra.mrb[0].mxu0 %v75
    %v200 = vpop.f32.mrb[0].mxu0
    %v201 = vadd.f32 %v97, %v200
    %v202 = vpop.f32.mrb[0].mxu0
    %203 = vdwg.mxu0
    %v204 = vadd.f32 %v166, %v171
    %v205 = vadd.f32 %v204, %v176
    %v206 = vadd.f32 %v205, %v181
    %v207 = vadd.f32 %v206, %v186
    %v208 = vadd.f32 %v207, %v191
    %v209 = vadd.f32 %v208, %v196
    %v210 = vadd.f32 %v209, %v201
    %v211 = vrot.slane %v210, 4
    %v212 = vadd.f32 %v210, %v211
    %v213 = vrot.slane %v212, 2
    %v214 = vadd.f32 %v212, %v213
    %v215 = vrot.slane %v214, 1
    %v216 = vadd.f32 %v214, %v215
    %v217 = vrcp.pop 64.0
    %v218 = vmul.f32 %v216, %v217
    %v219 = vsub.f32 %v166, %v218
    %v220 = vsub.f32 %v171, %v218
    %v221 = vsub.f32 %v176, %v218
    %v222 = vsub.f32 %v181, %v218
    %v223 = vsub.f32 %v186, %v218
    %v224 = vsub.f32 %v191, %v218
    %v225 = vsub.f32 %v196, %v218
    %v226 = vsub.f32 %v201, %v218
    %v227 = vmul.f32 %v219, %v219
    %v228 = vmul.f32 %v220, %v220
    %v229 = vmul.f32 %v221, %v221
    %v230 = vmul.f32 %v222, %v222
    %v231 = vmul.f32 %v223, %v223
    %v232 = vmul.f32 %v224, %v224
    %v233 = vmul.f32 %v225, %v225
    %v234 = vmul.f32 %v226, %v226
    %v235 = vadd.f32 %v227, %v228
    %v236 = vadd.f32 %v235, %v229
    %v237 = vadd.f32 %v236, %v230
    %v238 = vadd.f32 %v237, %v231
    %v239 = vadd.f32 %v238, %v232
    %v240 = vadd.f32 %v239, %v233
    %v241 = vadd.f32 %v240, %v234
    %v242 = vrot.slane %v241, 4
    %v243 = vadd.f32 %v241, %v242
    %v244 = vrot.slane %v243, 2
    %v245 = vadd.f32 %v243, %v244
    %v246 = vrot.slane %v245, 1
    %v247 = vadd.f32 %v245, %v246
    %v248 = vmul.f32 %v247, %v217
    %v249 = vadd.f32 %v248, 1e-05
    %v250 = vrsqrt.pop %v249
    %v251 = vmul.f32 %v219, %v250
    %v252 = vmul.f32 %v220, %v250
    %v253 = vmul.f32 %v221, %v250
    %v254 = vmul.f32 %v222, %v250
    %v255 = vmul.f32 %v223, %v250
    %v256 = vmul.f32 %v224, %v250
    %v257 = vmul.f32 %v225, %v250
    %v258 = vmul.f32 %v226, %v250
    %v259 = vld [vmem:[%s3] sm:$0x1]
    %v261 = vlaneseq
    %v262 = vshrl.u32 %v261, 7
    %v263 = vsub.s32 0, %v262
    %v264 = vrot.slane %v259, %v263
    %v266 = vmul.f32 %v251, %v264
    %v267 = vmul.f32 %v252, %v264
    %v268 = vmul.f32 %v253, %v264
    %v269 = vmul.f32 %v254, %v264
    %v270 = vmul.f32 %v255, %v264
    %v271 = vmul.f32 %v256, %v264
    %v272 = vmul.f32 %v257, %v264
    %v273 = vmul.f32 %v258, %v264
    %v274 = vld [vmem:[%s4] sm:$0x1]
    %v276 = vlaneseq
    %v277 = vshrl.u32 %v276, 7
    %v278 = vsub.s32 0, %v277
    %v279 = vrot.slane %v274, %v278
    %v281 = vadd.f32 %v266, %v279
    %v282 = vadd.f32 %v267, %v279
    %v283 = vadd.f32 %v268, %v279
    %v284 = vadd.f32 %v269, %v279
    %v285 = vadd.f32 %v270, %v279
    %v286 = vadd.f32 %v271, %v279
    %v287 = vadd.f32 %v272, %v279
    %v288 = vadd.f32 %v273, %v279
    %v289 = vmax.f32 %v281, 0.0
    %v290 = vmax.f32 %v282, 0.0
    %v291 = vmax.f32 %v283, 0.0
    %v292 = vmax.f32 %v284, 0.0
    %v293 = vmax.f32 %v285, 0.0
    %v294 = vmax.f32 %v286, 0.0
    %v295 = vmax.f32 %v287, 0.0
    %v296 = vmax.f32 %v288, 0.0
    %v297 = vld [vmem:[#allocation7] sm:$0xff]
    %v298 = vld [vmem:[#allocation7 + $0x8] sm:$0xff]
    %v299 = vld [vmem:[#allocation7 + $0x10] sm:$0xff]
    %v300 = vld [vmem:[#allocation7 + $0x18] sm:$0xff]
    %v301 = vld [vmem:[#allocation7 + $0x20] sm:$0xff]
    %v302 = vld [vmem:[#allocation7 + $0x28] sm:$0xff]
    %v303 = vld [vmem:[#allocation7 + $0x30] sm:$0xff]
    %v304 = vld [vmem:[#allocation7 + $0x38] sm:$0xff]
    %v305 = vld [vmem:[#allocation7 + $0x40] sm:$0xff]
    %v306 = vld [vmem:[#allocation7 + $0x48] sm:$0xff]
    %v307 = vld [vmem:[#allocation7 + $0x50] sm:$0xff]
    %v308 = vld [vmem:[#allocation7 + $0x58] sm:$0xff]
    %v309 = vld [vmem:[#allocation7 + $0x60] sm:$0xff]
    %v310 = vld [vmem:[#allocation7 + $0x68] sm:$0xff]
    %v311 = vld [vmem:[#allocation7 + $0x70] sm:$0xff]
    %v312 = vld [vmem:[#allocation7 + $0x78] sm:$0xff]
    %v313 = vld [vmem:[%s6] sm:$0x1]
    %v315 = vlaneseq
    %v316 = vshrl.u32 %v315, 7
    %v317 = vsub.s32 0, %v316
    %v318 = vrot.slane %v313, %v317
    %320 = vmatprep.subr.mxu0 0.0
    %321 = vmatpush1.msra.mxu0 %v297
    %322 = vmatprep.subr.mxu0 0.0
    %323 = vmatpush1.msra.mxu0 %v298
    %324 = vmatprep.subr.mxu0 0.0
    %325 = vmatpush1.msra.mxu0 %v299
    %326 = vmatprep.subr.mxu0 0.0
    %327 = vmatpush1.msra.mxu0 %v300
    %328 = vmatprep.subr.mxu0 0.0
    %329 = vmatpush1.msra.mxu0 %v301
    %330 = vmatprep.subr.mxu0 0.0
    %331 = vmatpush1.msra.mxu0 %v302
    %332 = vmatprep.subr.mxu0 0.0
    %333 = vmatpush1.msra.mxu0 %v303
    %334 = vmatprep.subr.mxu0 0.0
    %335 = vmatpush1.msra.mxu0 %v304
    %336 = vmatprep.subr.mxu0 0.0
    %337 = vmatpush1.msra.mxu0 %v305
    %338 = vmatprep.subr.mxu0 0.0
    %339 = vmatpush1.msra.mxu0 %v306
    %340 = vmatprep.subr.mxu0 0.0
    %341 = vmatpush1.msra.mxu0 %v307
    %342 = vmatprep.subr.mxu0 0.0
    %343 = vmatpush1.msra.mxu0 %v308
    %344 = vmatprep.subr.mxu0 0.0
    %345 = vmatpush1.msra.mxu0 %v309
    %346 = vmatprep.subr.mxu0 0.0
    %347 = vmatpush1.msra.mxu0 %v310
    %348 = vmatprep.subr.mxu0 0.0
    %349 = vmatpush1.msra.mxu0 %v311
    %350 = vmatprep.subr.mxu0 0.0
    %351 = vmatpush1.msra.mxu0 %v312
    %352 = vmatprep.subr.mxu0 0.0
    %353 = vmatpush1.msra.mxu0 0.0
    %354 = vmatprep.subr.mxu0 0.0
    %355 = vmatpush1.msra.mxu0 0.0
    %356 = vmatprep.subr.mxu0 0.0
    %357 = vmatpush1.msra.mxu0 0.0
    %358 = vmatprep.subr.mxu0 0.0
    %359 = vmatpush1.msra.mxu0 0.0
    %360 = vmatprep.subr.mxu0 0.0
    %361 = vmatpush1.msra.mxu0 0.0
    %362 = vmatprep.subr.mxu0 0.0
    %363 = vmatpush1.msra.mxu0 0.0
    %364 = vmatprep.subr.mxu0 0.0
    %365 = vmatpush1.msra.mxu0 0.0
    %366 = vmatprep.subr.mxu0 0.0
    %367 = vmatpush1.msra.mxu0 0.0
    %368 = vmatprep.subr.mxu0 0.0
    %369 = vmatpush1.msra.mxu0 0.0
    %370 = vmatprep.subr.mxu0 0.0
    %371 = vmatpush1.msra.mxu0 0.0
    %372 = vmatprep.subr.mxu0 0.0
    %373 = vmatpush1.msra.mxu0 0.0
    %374 = vmatprep.subr.mxu0 0.0
    %375 = vmatpush1.msra.mxu0 0.0
    %376 = vmatprep.subr.mxu0 0.0
    %377 = vmatpush1.msra.mxu0 0.0
    %378 = vmatprep.subr.mxu0 0.0
    %379 = vmatpush1.msra.mxu0 0.0
    %380 = vmatprep.subr.mxu0 0.0
    %381 = vmatpush1.msra.mxu0 0.0
    %382 = vmatprep.subr.mxu0 0.0
    %383 = vmatpush1.msra.mxu0 0.0
    %384 = vmatprep.mubr.f32.mxu0 0.0
    %385 = vmatmul.mubr.f32.gmra.mrb[0].mxu0 %v289
    %v386 = vpop.f32.mrb[0].mxu0
    %v387 = vadd.f32 %v318, %v386
    %v388 = vpop.f32.mrb[0].mxu0
    %389 = vmatprep.mubr.f32.mxu0 0.0
    %390 = vmatmul.mubr.f32.gmra.mrb[0].mxu0 %v290
    %v391 = vpop.f32.mrb[0].mxu0
    %v392 = vadd.f32 %v318, %v391
    %v393 = vpop.f32.mrb[0].mxu0
    %394 = vmatprep.mubr.f32.mxu0 0.0
    %395 = vmatmul.mubr.f32.gmra.mrb[0].mxu0 %v291
    %v396 = vpop.f32.mrb[0].mxu0
    %v397 = vadd.f32 %v318, %v396
    %v398 = vpop.f32.mrb[0].mxu0
    %399 = vmatprep.mubr.f32.mxu0 0.0
    %400 = vmatmul.mubr.f32.gmra.mrb[0].mxu0 %v292
    %v401 = vpop.f32.mrb[0].mxu0
    %v402 = vadd.f32 %v318, %v401
    %v403 = vpop.f32.mrb[0].mxu0
    %404 = vmatprep.mubr.f32.mxu0 0.0
    %405 = vmatmul.mubr.f32.gmra.mrb[0].mxu0 %v293
    %v406 = vpop.f32.mrb[0].mxu0
    %v407 = vadd.f32 %v318, %v406
    %v408 = vpop.f32.mrb[0].mxu0
    %409 = vmatprep.mubr.f32.mxu0 0.0
    %410 = vmatmul.mubr.f32.gmra.mrb[0].mxu0 %v294
    %v411 = vpop.f32.mrb[0].mxu0
    %v412 = vadd.f32 %v318, %v411
    %v413 = vpop.f32.mrb[0].mxu0
    %414 = vmatprep.mubr.f32.mxu0 0.0
    %415 = vmatmul.mubr.f32.gmra.mrb[0].mxu0 %v295
    %v416 = vpop.f32.mrb[0].mxu0
    %v417 = vadd.f32 %v318, %v416
    %v418 = vpop.f32.mrb[0].mxu0
    %419 = vmatprep.mubr.f32.mxu0 0.0
    %420 = vmatmul.mubr.f32.gmra.mrb[0].mxu0 %v296
    %v421 = vpop.f32.mrb[0].mxu0
    %v422 = vadd.f32 %v318, %v421
    %v423 = vpop.f32.mrb[0].mxu0
    %424 = vdwg.mxu0
    %v425 = vmul.f32 %v387, %v387
    %v426 = vmul.f32 %v392, %v392
    %v427 = vmul.f32 %v397, %v397
    %v428 = vmul.f32 %v402, %v402
    %v429 = vmul.f32 %v407, %v407
    %v430 = vmul.f32 %v412, %v412
    %v431 = vmul.f32 %v417, %v417
    %v432 = vmul.f32 %v422, %v422
    %433 = vadd.xlane.f32.xlu0 %v425
    %v434 = vpop.xlane.xlu0 %433
    %435 = vadd.xlane.f32.xlu0 %v426
    %v436 = vpop.xlane.xlu0 %435
    %437 = vadd.xlane.f32.xlu0 %v427
    %v438 = vpop.xlane.xlu0 %437
    %439 = vadd.xlane.f32.xlu0 %v428
    %v440 = vpop.xlane.xlu0 %439
    %441 = vadd.xlane.f32.xlu0 %v429
    %v442 = vpop.xlane.xlu0 %441
    %443 = vadd.xlane.f32.xlu0 %v430
    %v444 = vpop.xlane.xlu0 %443
    %445 = vadd.xlane.f32.xlu0 %v431
    %v446 = vpop.xlane.xlu0 %445
    %447 = vadd.xlane.f32.xlu0 %v432
    %v448 = vpop.xlane.xlu0 %447
    %v449 = vmax.f32 %v434, 1e-24
    %v450 = vmax.f32 %v436, 1e-24
    %v451 = vmax.f32 %v438, 1e-24
    %v452 = vmax.f32 %v440, 1e-24
    %v453 = vmax.f32 %v442, 1e-24
    %v454 = vmax.f32 %v444, 1e-24
    %v455 = vmax.f32 %v446, 1e-24
    %v456 = vmax.f32 %v448, 1e-24
    %v457 = vrsqrt.pop %v449
    %v458 = vrsqrt.pop %v450
    %v459 = vrsqrt.pop %v451
    %v460 = vrsqrt.pop %v452
    %v461 = vrsqrt.pop %v453
    %v462 = vrsqrt.pop %v454
    %v463 = vrsqrt.pop %v455
    %v464 = vrsqrt.pop %v456
    %v465 = vmul.f32 %v387, %v457
    %v466 = vmul.f32 %v392, %v458
    %v467 = vmul.f32 %v397, %v459
    %v468 = vmul.f32 %v402, %v460
    %v469 = vmul.f32 %v407, %v461
    %v470 = vmul.f32 %v412, %v462
    %v471 = vmul.f32 %v417, %v463
    %v472 = vmul.f32 %v422, %v464
    %v473 = vpack.c.bf16 %v466, %v465
    %v474 = vpack.c.bf16 %v468, %v467
    %v475 = vpack.c.bf16 %v470, %v469
    %v476 = vpack.c.bf16 %v472, %v471
    %v481 = vunpack.c.l.b16 %v473
    %v482 = vunpack.c.h.b16 %v473
    %v483 = vunpack.c.l.b16 %v474
    %v484 = vunpack.c.h.b16 %v474
    %v485 = vunpack.c.l.b16 %v475
    %v486 = vunpack.c.h.b16 %v475
    %v487 = vunpack.c.l.b16 %v476
    %v488 = vunpack.c.h.b16 %v476
    %v489 = vpack.c.b16 %v481, %v481
    %v490 = vpack.c.b16 %v482, %v482
    %v491 = vpack.c.b16 %v483, %v483
    %v492 = vpack.c.b16 %v484, %v484
    %v493 = vpack.c.b16 %v485, %v485
    %v494 = vpack.c.b16 %v486, %v486
    %v495 = vpack.c.b16 %v487, %v487
    %v496 = vpack.c.b16 %v488, %v488
    %505 = vst [vmem:[#allocation8] sm:$0xf] %v489
    %506 = vst [vmem:[#allocation8 + $0x4] sm:$0xf] %v490
    %507 = vst [vmem:[#allocation8 + $0x8] sm:$0xf] %v491
    %508 = vst [vmem:[#allocation8 + $0xc] sm:$0xf] %v492
    %509 = vst [vmem:[#allocation8 + $0x10] sm:$0xf] %v493
    %510 = vst [vmem:[#allocation8 + $0x14] sm:$0xf] %v494
    %511 = vst [vmem:[#allocation8 + $0x18] sm:$0xf] %v495
    %512 = vst [vmem:[#allocation8 + $0x1c] sm:$0xf] %v496
    // Predicated region
    $region42: #{tpu_custom_call.1} parent=1 // pred_check
      _
    $region43: #{tpu_custom_call.1} parent=1 // pred_check_branch
      %514 = sbr.rel (0) target = $region45
    $region44: #{tpu_custom_call.1} parent=1 // pred_region
      %s516 = ssub.s32 512, 512
      %517 = vsyncadd [#allocation4], %s516
      %s518 = sshll.u32 [#allocation8], 4
      %s519 = int_to_ptr.vmem [resolvable:$true] %s518
      %524 = dma.vmem_to_hbm [thread:$0]  %s519, 512, %s7, [#allocation4], 64, 64, 4
    $region45: #{tpu_custom_call.1} parent=1 // pred_fallthru
      _
    // Predicated region
    $region46: #{tpu_custom_call.1} parent=1 // pred_check
      _
    $region47: #{tpu_custom_call.1} parent=1 // pred_check_branch
      %526 = sbr.rel (0) target = $region49
    $region48: #{tpu_custom_call.1} parent=1 // pred_region
      %527 = dma.done [#allocation4], 512
    $region49: #{tpu_custom_call.1} parent=1 // pred_fallthru
      _
    %528 = vsyncpa [#allocation3], 1
    %529 = vsyncpa [#allocation6], 1
    %530 = vsyncpa [#allocation4], 1

</llo_original>
